<compile_context>
chip_gen: v6e
topology: v6e:2x2x1
jax: 0.10.0
libtpu: 0.0.40
codegen_flags: <defaults>
</compile_context>

<pallas_src>
import jax
import jax.numpy as jnp
from jax.experimental import pallas as pl
from jax.experimental.pallas import tpu as pltpu


def _spk_row_kernel(ids_ref, row_ref, emb_ref, out_ref):
    # ids_ref : SMEM (B*T,) int32  -- consumed by the index_maps (gather); unused here.
    # row_ref : VMEM (1, 1, gin)   -- embedding-table row for this (b, t) (gathered).
    # emb_ref : VMEM (1, 1, gin)   -- spk_emb row for batch b.
    # out_ref : VMEM (1, 1, 1, gin)
    del ids_ref
    out_ref[...] = (
        row_ref[...].astype(jnp.float32) + emb_ref[...].astype(jnp.float32)
    ).reshape(out_ref.shape).astype(out_ref.dtype)


def spk_forward(spk_id, spk_emb, embed_table):
    """spk_id: (B, T) int, spk_emb: (B, gin) f32, embed_table: (n_spk, gin) f32.
    Returns g with PyTorch layout (B, gin, T)."""
    B, T = spk_id.shape
    n_spk, gin = embed_table.shape
    BT = B * T

    # 1-D int32 ids for scalar prefetch (1-D SMEM pads only to next_pow2(4*BT) bytes;
    # no 2-D SMEM padding penalty).  Cast only if the caller didn't pre-cast.
    ids = spk_id.reshape(BT)
    if ids.dtype != jnp.int32:
        ids = ids.astype(jnp.int32)

    # Free reshapes so each BlockSpec's last two dims equal the full array dims.
    table3 = embed_table.reshape(n_spk, 1, gin)
    emb3 = spk_emb.reshape(B, 1, gin)

    itemsize = jnp.dtype(embed_table.dtype).itemsize
    cost = pl.CostEstimate(
        flops=BT * gin,                                   # one add per output element
        transcendentals=0,
        bytes_accessed=itemsize * 3 * BT * gin + 4 * BT,  # rows + emb + out + ids
    )

    grid_spec = pltpu.PrefetchScalarGridSpec(
        num_scalar_prefetch=1,
        grid=(B, T),
        in_specs=[
            # Data-dependent gather: fetch only table row ids[b*T + t].
            pl.BlockSpec((1, 1, gin), lambda b, t, ids: (ids[b * T + t], 0, 0)),
            # spk_emb contribution is a plain per-batch broadcast-add (block index = b).
            pl.BlockSpec((1, 1, gin), lambda b, t, ids: (b, 0, 0)),
        ],
        out_specs=pl.BlockSpec((1, 1, 1, gin), lambda b, t, ids: (b, t, 0, 0)),
    )

    g4 = pl.pallas_call(
        _spk_row_kernel,
        out_shape=jax.ShapeDtypeStruct((B, T, 1, gin), embed_table.dtype),
        grid_spec=grid_spec,
        compiler_params=pltpu.CompilerParams(
            # Every (b, t) writes a distinct output block -> both axes parallel
            # (shards across v7x's 2 TensorCores; harmless elsewhere).
            dimension_semantics=("parallel", "parallel"),
        ),
        cost_estimate=cost,
    )(ids, table3, emb3)

    if T == 1:
        # (B, 1, 1, gin) -> (B, gin, 1) is the same data: pure layout no-op.
        return g4.reshape(B, gin, T)
    # TODO(synk): when T >= 128 and T % 128 == 0, transpose the (T, gin) tile in-kernel
    # and store directly into a (B, gin, T) out_shape (lane-dense) to skip this extra
    # HBM pass; for small T the wrapper transpose is cheaper than lane-masked stores.
    return jnp.transpose(g4.reshape(B, T, gin), (0, 2, 1))


if __name__ == "__main__":
    key = jax.random.PRNGKey(0)
    k_tab, k_emb, k_id = jax.random.split(key, 3)

    n_speakers, gin = 16, 128   # gin_channels (lane-aligned)
    # nn.Embedding(n_speakers, gin) default init ~ N(0, 1), deterministic here.
    embed_table = jax.random.normal(k_tab, (n_speakers, gin), dtype=jnp.float32)

    # Case 1: canonical VITS-style usage, spk_id of shape (B, 1).
    B, T = 2, 1
    spk_emb = jax.random.normal(k_emb, (B, gin), dtype=jnp.float32)
    spk_id = jax.random.randint(k_id, (B, T), 0, n_speakers, dtype=jnp.int32)
    g = jax.block_until_ready(spk_forward(spk_id, spk_emb, embed_table))
    ref = jnp.transpose(embed_table[spk_id], (0, 2, 1)) + spk_emb[:, :, None]
    assert g.shape == (B, gin, T)
    assert jnp.allclose(g, ref, atol=1e-6, rtol=1e-6)

    # Case 2: T > 1 exercises the per-(b, t) gather + per-batch broadcast-add path.
    B2, T2 = 2, 4
    k_emb2, k_id2 = jax.random.split(k_id)
    spk_emb2 = jax.random.normal(k_emb2, (B2, gin), dtype=jnp.float32)
    spk_id2 = jax.random.randint(k_id2, (B2, T2), 0, n_speakers, dtype=jnp.int32)
    g2 = jax.block_until_ready(spk_forward(spk_id2, spk_emb2, embed_table))
    ref2 = jnp.transpose(embed_table[spk_id2], (0, 2, 1)) + spk_emb2[:, :, None]
    assert g2.shape == (B2, gin, T2)
    assert jnp.allclose(g2, ref2, atol=1e-6, rtol=1e-6)

    print("KERNEL_OK")
</pallas_src>

<mosaic_0001>
module attributes {stable_mosaic.version = 11 : i64} {
  func.func @_spk_row_kernel(%arg0: i32, %arg1: i32, %arg2: memref<2xi32, #tpu.memory_space<smem>>, %arg3: memref<1x1x128xf32, #tpu.memory_space<vmem>>, %arg4: memref<1x1x128xf32, #tpu.memory_space<vmem>>, %arg5: memref<1x1x1x128xf32, #tpu.memory_space<vmem>>) attributes {dimension_semantics = [#tpu.dimension_semantics<parallel>, #tpu.dimension_semantics<parallel>], iteration_bounds = array<i64: 2, 1>, scalar_prefetch = 1 : i64, scratch_operands = 0 : i64, tpu.core_type = #tpu.core_type<tc>, window_params = [{transform_indices = @transform_0, window_bounds = array<i64: 1, 1, 128>}, {transform_indices = @transform_1, window_bounds = array<i64: 1, 1, 128>}, {transform_indices = @transform_2, window_bounds = array<i64: 1, 1, 1, 128>}]} {
    %c0 = arith.constant 0 : index
    %c0_0 = arith.constant 0 : index
    %c0_1 = arith.constant 0 : index
    %0 = vector.load %arg3[%c0, %c0_0, %c0_1] : memref<1x1x128xf32, #tpu.memory_space<vmem>>, vector<1x1x128xf32>
    %c0_2 = arith.constant 0 : index
    %c0_3 = arith.constant 0 : index
    %c0_4 = arith.constant 0 : index
    %1 = vector.load %arg4[%c0_2, %c0_3, %c0_4] : memref<1x1x128xf32, #tpu.memory_space<vmem>>, vector<1x1x128xf32>
    %2 = arith.addf %0, %1 : vector<1x1x128xf32>
    %3 = vector.shape_cast %2 : vector<1x1x128xf32> to vector<1x1x1x128xf32>
    %c0_5 = arith.constant 0 : index
    %c0_6 = arith.constant 0 : index
    %c0_7 = arith.constant 0 : index
    %c0_8 = arith.constant 0 : index
    %4 = vector.load %arg5[%c0_5, %c0_6, %c0_7, %c0_8] : memref<1x1x1x128xf32, #tpu.memory_space<vmem>>, vector<1x1x1x128xf32>
    tpu.vector_store %arg5[%c0_5, %c0_6, %c0_7, %c0_8], %3 {strides = array<i32>} : memref<1x1x1x128xf32, #tpu.memory_space<vmem>>, vector<1x1x1x128xf32>,
    return
  }
  func.func @transform_0(%arg0: i32, %arg1: i32, %arg2: memref<2xi32, #tpu.memory_space<smem>>) -> (i32, i32, i32) {
    %c1_i32 = arith.constant 1 : i32
    %0 = arith.muli %arg0, %c1_i32 : i32
    %1 = arith.addi %0, %arg1 : i32
    %2 = arith.index_cast %1 : i32 to index
    %3 = memref.load %arg2[%2] : memref<2xi32, #tpu.memory_space<smem>>
    %c0_i32 = arith.constant 0 : i32
    %c0_i32_0 = arith.constant 0 : i32
    %c0_i32_1 = arith.constant 0 : i32
    return %3, %c0_i32, %c0_i32_0 : i32, i32, i32
  }
  func.func @transform_1(%arg0: i32, %arg1: i32, %arg2: memref<2xi32, #tpu.memory_space<smem>>) -> (i32, i32, i32) {
    %c0_i32 = arith.constant 0 : i32
    %c0_i32_0 = arith.constant 0 : i32
    %c0_i32_1 = arith.constant 0 : i32
    return %arg0, %c0_i32, %c0_i32_0 : i32, i32, i32
  }
  func.func @transform_2(%arg0: i32, %arg1: i32, %arg2: memref<2xi32, #tpu.memory_space<smem>>) -> (i32, i32, i32, i32) {
    %c0_i32 = arith.constant 0 : i32
    %c0_i32_0 = arith.constant 0 : i32
    %c0_i32_1 = arith.constant 0 : i32
    return %arg0, %arg1, %c0_i32, %c0_i32_0 : i32, i32, i32, i32
  }
}

</mosaic_0001>

<llo_original>
// kernel: tpu_custom_call.1
$region0: #{tpu_custom_call.1}
  #allocation0 [shape = 'u32[]', space=smem, size = 0x4, offset = 0x4, fixed_abs, tag = 'smem constant byte address 0x4 - core index']
  #allocation1 [shape = 'u32[144,128]{1,0:T(1,128)}', space=vmem, size = 0x12000, scoped, tag = 'internal scratch']
  #allocation2 [shape = 's32[1]{0}', space=sflag, size = 0x4, scoped, tag = 'scoped memory for tpu_custom_call.1']
  #allocation3 [shape = 'u8[512]{0}', space=smem, size = 0x200, scoped, tag = 'prefetched SMEM operand 0']
  %s0 = inlined_call_operand.hbm [shape: s32[2], index: 0, kind: input, shape index: {}]
  %s1 = inlined_call_operand.hbm [shape: f32[16,1,128], index: 1, kind: input, shape index: {}]
  %s2 = inlined_call_operand.vmem [shape: f32[2,1,128], index: 2, kind: input, shape index: {}]
  %s3 = inlined_call_operand.hbm [shape: f32[2,1,1,128], index: 3, kind: output, shape index: {}]
  %s4 = sld [smem:[#allocation0]]
  $region45: #{tpu_custom_call.1} parent=0
    _
  %s6 = ssub.s32 1, %s4
  %s7 = scalar_select 0, %s6, %s4
  %9 = dma.hbm_to_smem %s0, 16, [#allocation3], [#allocation2]
  %10 = dma.done [#allocation2], 16
  %11 = sfence
  $region1: #{tpu_custom_call.1} parent=0
    #allocation4 [shape = 'u8[1024]{0}', space=vmem, size = 0x400, scoped, tag = 'input window, operand 1']
    #allocation5 [shape = 's32[2]{0}', space=sflag, size = 0x8, scoped, tag = 'scoped memory for tpu_custom_call.1']
    #allocation6 [shape = 's32[2]{0}', space=sflag, size = 0x8, scoped, tag = 'scoped memory for tpu_custom_call.1']
    #allocation7 [shape = 'u8[1024]{0}', space=vmem, size = 0x400, scoped, tag = 'output window, operand 0']
    %12 = vsyncpa [#allocation5], 0
    %s13 = scalar_lea.sflag [#allocation5], 1
    %14 = vsyncpa %s13, 0
    %15 = vsyncpa [#allocation6], 0
    %s16 = scalar_lea.sflag [#allocation6], 1
    %17 = vsyncpa %s16, 0
    loop: start=0, step=1, limit=4
    $region2: #{tpu_custom_call.1} parent=1 // loop_pre_header
      _
    $region3: #{tpu_custom_call.1} parent=1 // loop_header
      %s19 = sphi 0, %s23
      %p20 = scmp.ge.s32.totalorder %s19, 4
      %s26 = sphi 0, %s38
      %s27 = sphi 0, %s34
      %s28 = sphi 0, %s26
      %s29 = sphi 0, %s27
      %s30 = sphi 0, %s28
      %s31 = sphi 0, %s29
      %s45 = sphi 0, %s47
      %s48 = sphi 0, %s45
      %s49 = sphi 0, %s48
      %s65 = sphi 0, %s49
      %s71 = sphi 0, %s73
      %s74 = sphi 0, %s71
      %s75 = sphi 0, %s74
      %s91 = sphi 0, %s75
      %s99 = sphi 0, %s101
      %s102 = sphi 0, %s99
      %s103 = sphi 0, %s102
      %s119 = sphi 0, %s103
    $region4: #{tpu_custom_call.1} parent=1 // loop_header_branch
      %22 = sbr.rel (%p20) target = $region8
    $region5: #{tpu_custom_call.1} parent=1 // loop_body
      %s24 = ssub.s32 %s19, 1
      %s25 = ssub.s32 %s19, 2
      %s32 = sadd.s32 1, %s27
      %p33 = scmp.ge.s32.totalorder %s32, 1
      %s34 = scalar_select %p33, 0, %s32
      %s35 = sadd.s32 1, %s26
      %s36 = scalar_select %p33, %s35, %s26
      %p37 = scmp.ge.s32.totalorder %s36, 2
      %s38 = scalar_select %p37, 0, %s36
      %s39 = sadd.s32 %s26, %s27
      %s40 = sld [smem:[#allocation3 + %s39]]
      %s41 = sadd.s32 %s38, %s34
      %s42 = sld [smem:[#allocation3 + %s41]]
      %s43 = ssub.s32 %s40, %s42
      %p44 = scmp.eq.s32.totalorder %s43, 0
      %s46 = sadd.s32 %s45, 1
      %s47 = scalar_select %p44, %s45, %s46
      %p50 = pneg %p44
      %p51 = scmp.eq.s32.totalorder %s19, 1
      %p52 = por %p50, %p51
      %p53 = scmp.ne.s32.totalorder %s45, %s48
      %p54 = scmp.eq.s32.totalorder %s19, 0
      %p55 = por %p53, %p54
      %p56 = scmp.ne.s32.totalorder %s45, %s48
      %p57 = scmp.eq.s32.totalorder %s24, 1
      %p58 = por %p56, %p57
      %p59 = scmp.ne.s32.totalorder %s48, %s49
      %p60 = scmp.eq.s32.totalorder %s24, 0
      %p61 = por %p59, %p60
      %p62 = scmp.ne.s32.totalorder %s48, %s49
      %p63 = scmp.eq.s32.totalorder %s25, 1
      %p64 = por %p62, %p63
      %p66 = scmp.ne.s32.totalorder %s49, %s65
      %p67 = scmp.eq.s32.totalorder %s25, 0
      %p68 = por %p66, %p67
      %s69 = ssub.s32 %s26, %s38
      %p70 = scmp.eq.s32.totalorder %s69, 0
      %s72 = sadd.s32 %s71, 1
      %s73 = scalar_select %p70, %s71, %s72
      %p76 = pneg %p70
      %p77 = scmp.eq.s32.totalorder %s19, 1
      %p78 = por %p76, %p77
      %p79 = scmp.ne.s32.totalorder %s71, %s74
      %p80 = scmp.eq.s32.totalorder %s19, 0
      %p81 = por %p79, %p80
      %p82 = scmp.ne.s32.totalorder %s71, %s74
      %p83 = scmp.eq.s32.totalorder %s24, 1
      %p84 = por %p82, %p83
      %p85 = scmp.ne.s32.totalorder %s74, %s75
      %p86 = scmp.eq.s32.totalorder %s24, 0
      %p87 = por %p85, %p86
      %p88 = scmp.ne.s32.totalorder %s74, %s75
      %p89 = scmp.eq.s32.totalorder %s25, 1
      %p90 = por %p88, %p89
      %p92 = scmp.ne.s32.totalorder %s75, %s91
      %p93 = scmp.eq.s32.totalorder %s25, 0
      %p94 = por %p92, %p93
      %s95 = ssub.s32 %s26, %s38
      %s96 = ssub.s32 %s27, %s34
      %s97 = sor.u32 %s95, %s96
      %p98 = scmp.eq.s32.totalorder %s97, 0
      %s100 = sadd.s32 %s99, 1
      %s101 = scalar_select %p98, %s99, %s100
      %p104 = pneg %p98
      %p105 = scmp.eq.s32.totalorder %s19, 1
      %p106 = por %p104, %p105
      %p107 = scmp.ne.s32.totalorder %s99, %s102
      %p108 = scmp.eq.s32.totalorder %s19, 0
      %p109 = por %p107, %p108
      %p110 = scmp.ne.s32.totalorder %s99, %s102
      %p111 = scmp.eq.s32.totalorder %s24, 1
      %p112 = por %p110, %p111
      %p113 = scmp.ne.s32.totalorder %s102, %s103
      %p114 = scmp.eq.s32.totalorder %s24, 0
      %p115 = por %p113, %p114
      %p116 = scmp.ne.s32.totalorder %s102, %s103
      %p117 = scmp.eq.s32.totalorder %s25, 1
      %p118 = por %p116, %p117
      %p120 = scmp.ne.s32.totalorder %s103, %s119
      %p121 = scmp.eq.s32.totalorder %s25, 0
      %p122 = por %p120, %p121
      %p123 = scmp.le.s32.totalorder 1, %s19
      %p124 = scmp.lt.s32.totalorder %s19, 3
      %p125 = pnand %p123, %p124
      %p126 = pneg %p125
      // Predicated region
      $region9: #{tpu_custom_call.1} parent=5 // pred_check
        _
      $region10: #{tpu_custom_call.1} parent=5 // pred_check_branch
        %128 = sbr.rel (%p125) target = $region12
      $region11: #{tpu_custom_call.1} parent=5 // pred_region
        %s129 = ssub.s32 %s19, 1
      $region12: #{tpu_custom_call.1} parent=5 // pred_fallthru
        _
      %p130 = scmp.lt.s32.totalorder %s19, 2
      // Predicated region
      $region13: #{tpu_custom_call.1} parent=5 // pred_check
        %p131 = pneg %p130
      $region14: #{tpu_custom_call.1} parent=5 // pred_check_branch
        %133 = sbr.rel (%p131) target = $region16
      $region15: #{tpu_custom_call.1} parent=5 // pred_region
        // Predicated region
        $region17: #{tpu_custom_call.1} parent=15 // pred_check
          %p134 = pneg %p55
        $region18: #{tpu_custom_call.1} parent=15 // pred_check_branch
          %136 = sbr.rel (%p134) target = $region20
        $region19: #{tpu_custom_call.1} parent=15 // pred_region
          %s137 = sand.u32 %s45, 1
          %s138 = scalar_lea.sflag [#allocation5], %s137
          %s139 = sand.u32 %s45, 1
          %s140 = scalar_lea.vmem [#allocation4], %s139
          %s141 = sadd.s32 %s26, %s27
          %s142 = sld [smem:[#allocation3 + %s141]]
          %s144 = ssub.s32 16, 16
          %145 = vsyncadd %s138, %s144
          %s146 = smul.addr %s142, 16
          %s147 = scalar_lea.hbm %s1, %s146
          %s149 = sshll.u32 %s140, 4
          %s150 = int_to_ptr.vmem [resolvable:$true] %s149
          %152 = dma.hbm_to_vmem [thread:$0]  %s147, 16, %s150, %s138
        $region20: #{tpu_custom_call.1} parent=15 // pred_fallthru
          _
        // Predicated region
        $region21: #{tpu_custom_call.1} parent=15 // pred_check
          %p153 = pneg %p81
        $region22: #{tpu_custom_call.1} parent=15 // pred_check_branch
          %155 = sbr.rel (%p153) target = $region24
        $region23: #{tpu_custom_call.1} parent=15 // pred_region
          %p156 = scmp.lt.s32.totalorder %s26, 1
          %s157 = scalar_select %p156, %s26, 1
          %s158 = scalar_lea.vmem %s2, %s157
        $region24: #{tpu_custom_call.1} parent=15 // pred_fallthru
          _
      $region16: #{tpu_custom_call.1} parent=5 // pred_fallthru
        _
      %p159 = scmp.le.s32.totalorder 1, %s19
      %p160 = scmp.lt.s32.totalorder %s19, 3
      %p161 = pnand %p159, %p160
      %p162 = pneg %p161
      // Predicated region
      $region25: #{tpu_custom_call.1} parent=5 // pred_check
        _
      $region26: #{tpu_custom_call.1} parent=5 // pred_check_branch
        %164 = sbr.rel (%p161) target = $region28
      $region27: #{tpu_custom_call.1} parent=5 // pred_region
        %s165 = ssub.s32 %s19, 1
        %s166 = sand.u32 %s48, 1
        %s167 = scalar_lea.sflag [#allocation5], %s166
        %s168 = sand.u32 %s48, 1
        %s169 = scalar_lea.vmem [#allocation4], %s168
        // Predicated region
        $region29: #{tpu_custom_call.1} parent=27 // pred_check
          %p170 = pneg %p61
        $region30: #{tpu_custom_call.1} parent=27 // pred_check_branch
          %172 = sbr.rel (%p170) target = $region32
        $region31: #{tpu_custom_call.1} parent=27 // pred_region
          %173 = dma.done %s167, 16
        $region32: #{tpu_custom_call.1} parent=27 // pred_fallthru
          _
        %s174 = sand.u32 %s48, 1
        %s175 = scalar_lea.sflag [#allocation5], %s174
        %s176 = sand.u32 %s48, 1
        %s177 = scalar_lea.vmem [#allocation4], %s176
        %p178 = pneg %p61
        %p179 = pneg %p58
        %p180 = scmp.lt.s32.totalorder %s28, 1
        %s181 = scalar_select %p180, %s28, 1
        %s182 = scalar_lea.vmem %s2, %s181
        %p183 = pneg %p87
        %p184 = pneg %p84
        %p185 = pneg %p115
        %p186 = pneg %p112
        %s187 = sand.u32 %s102, 1
        %s188 = scalar_lea.sflag [#allocation6], %s187
        %s189 = sand.u32 %s102, 1
        %s190 = scalar_lea.vmem [#allocation7], %s189
        %s191 = sadd.s32 %s28, %s29
        %s192 = sld [smem:[#allocation3 + %s191]]
        %p193 = scmp.lt.s32.totalorder %s28, 1
        %s194 = scalar_select %p193, %s28, 1
        %s195 = scalar_lea.vmem %s2, %s194
        %v196 = vld [vmem:[%s169] sm:$0x1]
        %v197 = vld [vmem:[%s195] sm:$0x1]
        %v198 = vadd.f32 %v196, %v197
        %199 = vst [vmem:[%s190] sm:$0x1] %v198
        %s200 = sand.u32 %s102, 1
        %s201 = scalar_lea.sflag [#allocation6], %s200
        %s202 = sand.u32 %s102, 1
        %s203 = scalar_lea.vmem [#allocation7], %s202
        // Predicated region
        $region33: #{tpu_custom_call.1} parent=27 // pred_check
          %p204 = pneg %p112
        $region34: #{tpu_custom_call.1} parent=27 // pred_check_branch
          %206 = sbr.rel (%p204) target = $region36
        $region35: #{tpu_custom_call.1} parent=27 // pred_region
          %s208 = ssub.s32 16, 16
          %209 = vsyncadd %s201, %s208
          %s210 = sadd.s32 %s29, %s28
          %s211 = smul.addr %s210, 16
          %s212 = scalar_lea.hbm %s3, %s211
          %s214 = sshll.u32 %s203, 4
          %s215 = int_to_ptr.vmem [resolvable:$true] %s214
          %217 = dma.vmem_to_hbm [thread:$0]  %s215, 16, %s212, %s201
        $region36: #{tpu_custom_call.1} parent=27 // pred_fallthru
          _
      $region28: #{tpu_custom_call.1} parent=5 // pred_fallthru
        _
      %p218 = scmp.le.s32.totalorder 2, %s19
      // Predicated region
      $region37: #{tpu_custom_call.1} parent=5 // pred_check
        %p219 = pneg %p218
      $region38: #{tpu_custom_call.1} parent=5 // pred_check_branch
        %221 = sbr.rel (%p219) target = $region40
      $region39: #{tpu_custom_call.1} parent=5 // pred_region
        %s222 = ssub.s32 %s19, 2
        // Predicated region
        $region41: #{tpu_custom_call.1} parent=39 // pred_check
          %p223 = pneg %p118
        $region42: #{tpu_custom_call.1} parent=39 // pred_check_branch
          %225 = sbr.rel (%p223) target = $region44
        $region43: #{tpu_custom_call.1} parent=39 // pred_region
          %s226 = sand.u32 %s103, 1
          %s227 = scalar_lea.sflag [#allocation6], %s226
          %s228 = sand.u32 %s103, 1
          %s229 = scalar_lea.vmem [#allocation7], %s228
          %230 = dma.done %s227, 16
        $region44: #{tpu_custom_call.1} parent=39 // pred_fallthru
          _
      $region40: #{tpu_custom_call.1} parent=5 // pred_fallthru
        _
    $region6: #{tpu_custom_call.1} parent=1 // loop_footer
      %s23 = sadd.s32 1, %s19
    $region7: #{tpu_custom_call.1} parent=1 // loop_footer_branch
      %18 = sbr.rel target = $region3
    $region8: #{tpu_custom_call.1} parent=1 // loop_exit
      _
    %231 = vsyncpa [#allocation5], 1
    %s232 = scalar_lea.sflag [#allocation5], 1
    %233 = vsyncpa %s232, 1
    %234 = vsyncpa [#allocation6], 1
    %s235 = scalar_lea.sflag [#allocation6], 1
    %236 = vsyncpa %s235, 1

</llo_original>
